<compile_context>
chip_gen: v5e
topology: v5e:2x2
jax: 0.10.0
libtpu: 0.0.40
codegen_flags: <defaults>
</compile_context>

<pallas_src>
import functools

import jax
import jax.numpy as jnp
from jax.experimental import pallas as pl
from jax.experimental.pallas import tpu as pltpu


def _make_conv_kernel(KH, KW, stride, Ho, Wo, Cin, NB):
    K = KH * KW * Cin
    HoWo = Ho * Wo

    def kernel(x_ref, w_ref, b_ref, o_ref, p_ref):
        # x_ref: (NB, KW, Cin, Hp*Wo)  column-shifted input (bf16), lane = Hp*Wo
        # w_ref: (Cout, K)             weight, tap-major (kh, kw, cin), bf16
        # b_ref: (Cout, 1)             f32 bias
        # o_ref: (NB, Cout, Ho*Wo)     lane-dense output (NCHW, H*W flattened)
        # p_ref: (K, NB*Ho*Wo)         bf16 im2col scratch; every entry is
        #                              rewritten each grid step -> no init needed.
        for b in range(NB):                       # static, NB is small
            col0 = b * HoWo
            for kh in range(KH):
                for kw in range(KW):
                    r0 = (kh * KW + kw) * Cin
                    if stride == 1:
                        # One full-lane-width copy per tap: the shifted/flattened
                        # input makes tap (kh,kw) a contiguous 256-lane window.
                        p_ref[r0:r0 + Cin, col0:col0 + HoWo] = (
                            x_ref[b, kw, :, kh * Wo: kh * Wo + HoWo])
                    else:
                        # Strided-H fallback (stride > 1): row-by-row copies.
                        for oh in range(Ho):
                            r = oh * stride + kh
                            p_ref[r0:r0 + Cin,
                                  col0 + oh * Wo: col0 + (oh + 1) * Wo] = (
                                x_ref[b, kw, :, r * Wo:(r + 1) * Wo])

        # Single MXU contraction, natural (M,K)@(K,N) feed, f32 accumulation.
        acc = jax.lax.dot_general(
            w_ref[...], p_ref[...],
            dimension_numbers=(((1,), (0,)), ((), ())),
            preferred_element_type=jnp.float32)          # (Cout, NB*Ho*Wo)

        acc = acc + b_ref[...]                # f32 bias, broadcast over lanes
        out = jnp.maximum(acc, 0.2 * acc)     # LeakyReLU(0.2): mul + max

        for b in range(NB):
            o_ref[b] = out[:, b * HoWo:(b + 1) * HoWo].astype(o_ref.dtype)

    return kernel


def _default_batch_block(N):
    """Fold the whole batch on single-TC chips; keep 2 grid steps on dual-TC."""
    if N <= 1:
        return max(N, 1)
    try:
        kind = jax.devices()[0].device_kind.lower()
        dual_core = ("v7" in kind) or ("v4" in kind)   # megacore chips
    except Exception:
        dual_core = True
    if dual_core and N % 2 == 0:
        return N // 2          # 2 parallel grid steps -> both TensorCores busy
    return N                   # v5e / v6e: one step, one big contraction


@functools.partial(jax.jit, static_argnames=("stride", "padding", "batch_block"))
def basic_conv(x_nchw, weight, bias, *, stride=1, padding=1, batch_block=None):
    """BasicConv forward: leaky_relu(conv2d(x, weight, bias), 0.2).

    x_nchw: (N, Cin, H, W)   weight: (Cout, Cin, KH, KW)   bias: (Cout,)
    returns (N, Cout, Ho, Wo)
    """
    N, Cin, H, W = x_nchw.shape
    Cout, _, KH, KW = weight.shape
    Ho = (H + 2 * padding - KH) // stride + 1
    Wo = (W + 2 * padding - KW) // stride + 1
    Hp = H + 2 * padding
    K = KH * KW * Cin
    HoWo = Ho * Wo
    mxu_dtype = jnp.bfloat16

    if batch_block is None:
        batch_block = _default_batch_block(N)
    assert N % batch_block == 0, "batch_block must divide the batch size"
    num_steps = N // batch_block

    # ---- XLA glue (layout only, one pass, no transpose of the main tensor) ----
    x_pad = jnp.pad(
        x_nchw, ((0, 0), (0, 0), (padding, padding), (padding, padding)))
    # Column-shift stack: for each kw take the (strided) W-window and flatten
    # (Hp, Wo) -> Hp*Wo, so every in-kernel tap is a static lane slice.
    cols = []
    for kw in range(KW):
        xk = jax.lax.slice(
            x_pad, (0, 0, 0, kw),
            (N, Cin, Hp, kw + (Wo - 1) * stride + 1),
            (1, 1, 1, stride))                       # (N, Cin, Hp, Wo)
        cols.append(xk.reshape(N, Cin, Hp * Wo))
    x_shift = jnp.stack(cols, axis=1).astype(mxu_dtype)   # (N, KW, Cin, Hp*Wo)

    # Weight flattened to tap-major (kh, kw, cin) order used by the kernel.
    w_flat = jnp.transpose(weight, (0, 2, 3, 1)).reshape(Cout, K).astype(mxu_dtype)
    b2 = bias.reshape(Cout, 1).astype(jnp.float32)

    kernel = _make_conv_kernel(KH, KW, stride, Ho, Wo, Cin, batch_block)

    out = pl.pallas_call(
        kernel,
        out_shape=jax.ShapeDtypeStruct((N, Cout, HoWo), x_nchw.dtype),
        grid_spec=pltpu.PrefetchScalarGridSpec(
            num_scalar_prefetch=0,
            grid=(num_steps,),
            in_specs=[
                pl.BlockSpec((batch_block, KW, Cin, Hp * Wo),
                             lambda i: (i, 0, 0, 0)),
                pl.BlockSpec((Cout, K), lambda i: (0, 0)),      # resident weight
                pl.BlockSpec((Cout, 1), lambda i: (0, 0)),      # resident bias
            ],
            out_specs=pl.BlockSpec((batch_block, Cout, HoWo),
                                   lambda i: (i, 0, 0)),
            scratch_shapes=[pltpu.VMEM((K, batch_block * HoWo), mxu_dtype)],
        ),
        compiler_params=pltpu.CompilerParams(
            dimension_semantics=("parallel",)),
    )(x_shift, w_flat, b2)

    # Unflatten H*W: pure metadata reshape, no transpose / extra HBM pass.
    return out.reshape(N, Cout, Ho, Wo)


def _reference(x, weight, bias, s, p, cast_dtype=None):
    """XLA reference; optionally cast conv operands like the kernel (bf16)."""
    xw = x if cast_dtype is None else x.astype(cast_dtype)
    ww = weight if cast_dtype is None else weight.astype(cast_dtype)
    r = jax.lax.conv_general_dilated(
        xw, ww, window_strides=(s, s), padding=[(p, p), (p, p)],
        dimension_numbers=("NCHW", "OIHW", "NCHW"),
        preferred_element_type=jnp.float32)
    r = r + bias[None, :, None, None]
    return jnp.maximum(r, 0.2 * r)


if __name__ == "__main__":
    # BasicConv(in_channel=4, out_channel=8, k_s=3, s=1, p=1)
    in_channel, out_channel, k_s, s, p = 4, 8, 3, 1, 1
    N, H, W = 2, 16, 16

    key = jax.random.PRNGKey(0)
    kx, kwt, kb = jax.random.split(key, 3)

    x = jax.random.normal(kx, (N, in_channel, H, W), dtype=jnp.float32)
    fan_in = in_channel * k_s * k_s
    bound = 1.0 / (fan_in ** 0.5)
    weight = jax.random.uniform(kwt, (out_channel, in_channel, k_s, k_s),
                                minval=-bound, maxval=bound, dtype=jnp.float32)
    bias = jax.random.uniform(kb, (out_channel,),
                              minval=-bound, maxval=bound, dtype=jnp.float32)

    # stride=1 (the module's configuration)
    y = jax.block_until_ready(basic_conv(x, weight, bias, stride=s, padding=p))
    assert y.shape == (N, out_channel, H, W)
    ref_bf16 = _reference(x, weight, bias, s, p, cast_dtype=jnp.bfloat16)
    assert jnp.allclose(y, ref_bf16, atol=2e-3, rtol=2e-3)
    # loose sanity check against the exact f32 module semantics (bf16 MXU inputs)
    ref_f32 = _reference(x, weight, bias, s, p, cast_dtype=None)
    assert jnp.allclose(y, ref_f32, atol=1e-1, rtol=1e-1)

    # stride=2 cross-check (exercises the strided-H fallback path)
    y2 = jax.block_until_ready(basic_conv(x, weight, bias, stride=2, padding=p))
    ref2 = _reference(x, weight, bias, 2, p, cast_dtype=jnp.bfloat16)
    assert y2.shape == ref2.shape
    assert jnp.allclose(y2, ref2, atol=2e-3, rtol=2e-3)

    print("KERNEL_OK")
</pallas_src>

<mosaic_0001>
module attributes {stable_mosaic.version = 11 : i64} {
  func.func @kernel(%arg0: i32, %arg1: memref<2x3x4x288xbf16, #tpu.memory_space<vmem>>, %arg2: memref<8x36xbf16, #tpu.memory_space<vmem>>, %arg3: memref<8x1xf32, #tpu.memory_space<vmem>>, %arg4: memref<2x8x256xf32, #tpu.memory_space<vmem>>, %arg5: memref<36x512xbf16, #tpu.memory_space<vmem>>) attributes {dimension_semantics = [#tpu.dimension_semantics<parallel>], iteration_bounds = array<i64: 1>, scalar_prefetch = 0 : i64, scratch_operands = 1 : i64, tpu.core_type = #tpu.core_type<tc>, window_params = [{transform_indices = @transform_0, window_bounds = array<i64: 2, 3, 4, 288>}, {pipeline_mode = #tpu.pipeline_mode<synchronous>, transform_indices = @transform_1, window_bounds = array<i64: 8, 36>}, {pipeline_mode = #tpu.pipeline_mode<synchronous>, transform_indices = @transform_2, window_bounds = array<i64: 8, 1>}, {transform_indices = @transform_3, window_bounds = array<i64: 2, 8, 256>}]} {
    %c0 = arith.constant 0 : index
    %c0_0 = arith.constant 0 : index
    %c0_1 = arith.constant 0 : index
    %c0_2 = arith.constant 0 : index
    %0 = vector.load %arg1[%c0, %c0_0, %c0_1, %c0_2] : memref<2x3x4x288xbf16, #tpu.memory_space<vmem>>, vector<1x1x4x256xbf16>
    %1 = vector.shape_cast %0 : vector<1x1x4x256xbf16> to vector<4x256xbf16>
    %c0_3 = arith.constant 0 : index
    %c0_4 = arith.constant 0 : index
    %2 = vector.load %arg5[%c0_3, %c0_4] : memref<36x512xbf16, #tpu.memory_space<vmem>>, vector<4x256xbf16>
    tpu.vector_store %arg5[%c0_3, %c0_4], %1 {strides = array<i32>} : memref<36x512xbf16, #tpu.memory_space<vmem>>, vector<4x256xbf16>,
    %c0_5 = arith.constant 0 : index
    %c1 = arith.constant 1 : index
    %c0_6 = arith.constant 0 : index
    %c0_7 = arith.constant 0 : index
    %3 = vector.load %arg1[%c0_5, %c1, %c0_6, %c0_7] : memref<2x3x4x288xbf16, #tpu.memory_space<vmem>>, vector<1x1x4x256xbf16>
    %4 = vector.shape_cast %3 : vector<1x1x4x256xbf16> to vector<4x256xbf16>
    %c4 = arith.constant 4 : index
    %c0_8 = arith.constant 0 : index
    %5 = vector.load %arg5[%c4, %c0_8] : memref<36x512xbf16, #tpu.memory_space<vmem>>, vector<4x256xbf16>
    tpu.vector_store %arg5[%c4, %c0_8], %4 {strides = array<i32>} : memref<36x512xbf16, #tpu.memory_space<vmem>>, vector<4x256xbf16>,
    %c0_9 = arith.constant 0 : index
    %c2 = arith.constant 2 : index
    %c0_10 = arith.constant 0 : index
    %c0_11 = arith.constant 0 : index
    %6 = vector.load %arg1[%c0_9, %c2, %c0_10, %c0_11] : memref<2x3x4x288xbf16, #tpu.memory_space<vmem>>, vector<1x1x4x256xbf16>
    %7 = vector.shape_cast %6 : vector<1x1x4x256xbf16> to vector<4x256xbf16>
    %c8 = arith.constant 8 : index
    %c0_12 = arith.constant 0 : index
    %8 = vector.load %arg5[%c8, %c0_12] : memref<36x512xbf16, #tpu.memory_space<vmem>>, vector<4x256xbf16>
    tpu.vector_store %arg5[%c8, %c0_12], %7 {strides = array<i32>} : memref<36x512xbf16, #tpu.memory_space<vmem>>, vector<4x256xbf16>,
    %c0_13 = arith.constant 0 : index
    %c0_14 = arith.constant 0 : index
    %c0_15 = arith.constant 0 : index
    %c16 = arith.constant 16 : index
    %9 = vector.load %arg1[%c0_13, %c0_14, %c0_15, %c16] : memref<2x3x4x288xbf16, #tpu.memory_space<vmem>>, vector<1x1x4x256xbf16>
    %10 = vector.shape_cast %9 : vector<1x1x4x256xbf16> to vector<4x256xbf16>
    %c12 = arith.constant 12 : index
    %c0_16 = arith.constant 0 : index
    %11 = vector.load %arg5[%c12, %c0_16] : memref<36x512xbf16, #tpu.memory_space<vmem>>, vector<4x256xbf16>
    tpu.vector_store %arg5[%c12, %c0_16], %10 {strides = array<i32>} : memref<36x512xbf16, #tpu.memory_space<vmem>>, vector<4x256xbf16>,
    %c0_17 = arith.constant 0 : index
    %c1_18 = arith.constant 1 : index
    %c0_19 = arith.constant 0 : index
    %c16_20 = arith.constant 16 : index
    %12 = vector.load %arg1[%c0_17, %c1_18, %c0_19, %c16_20] : memref<2x3x4x288xbf16, #tpu.memory_space<vmem>>, vector<1x1x4x256xbf16>
    %13 = vector.shape_cast %12 : vector<1x1x4x256xbf16> to vector<4x256xbf16>
    %c16_21 = arith.constant 16 : index
    %c0_22 = arith.constant 0 : index
    %14 = vector.load %arg5[%c16_21, %c0_22] : memref<36x512xbf16, #tpu.memory_space<vmem>>, vector<4x256xbf16>
    tpu.vector_store %arg5[%c16_21, %c0_22], %13 {strides = array<i32>} : memref<36x512xbf16, #tpu.memory_space<vmem>>, vector<4x256xbf16>,
    %c0_23 = arith.constant 0 : index
    %c2_24 = arith.constant 2 : index
    %c0_25 = arith.constant 0 : index
    %c16_26 = arith.constant 16 : index
    %15 = vector.load %arg1[%c0_23, %c2_24, %c0_25, %c16_26] : memref<2x3x4x288xbf16, #tpu.memory_space<vmem>>, vector<1x1x4x256xbf16>
    %16 = vector.shape_cast %15 : vector<1x1x4x256xbf16> to vector<4x256xbf16>
    %c20 = arith.constant 20 : index
    %c0_27 = arith.constant 0 : index
    %17 = vector.load %arg5[%c20, %c0_27] : memref<36x512xbf16, #tpu.memory_space<vmem>>, vector<4x256xbf16>
    tpu.vector_store %arg5[%c20, %c0_27], %16 {strides = array<i32>} : memref<36x512xbf16, #tpu.memory_space<vmem>>, vector<4x256xbf16>,
    %c0_28 = arith.constant 0 : index
    %c0_29 = arith.constant 0 : index
    %c0_30 = arith.constant 0 : index
    %c32 = arith.constant 32 : index
    %18 = vector.load %arg1[%c0_28, %c0_29, %c0_30, %c32] : memref<2x3x4x288xbf16, #tpu.memory_space<vmem>>, vector<1x1x4x256xbf16>
    %19 = vector.shape_cast %18 : vector<1x1x4x256xbf16> to vector<4x256xbf16>
    %c24 = arith.constant 24 : index
    %c0_31 = arith.constant 0 : index
    %20 = vector.load %arg5[%c24, %c0_31] : memref<36x512xbf16, #tpu.memory_space<vmem>>, vector<4x256xbf16>
    tpu.vector_store %arg5[%c24, %c0_31], %19 {strides = array<i32>} : memref<36x512xbf16, #tpu.memory_space<vmem>>, vector<4x256xbf16>,
    %c0_32 = arith.constant 0 : index
    %c1_33 = arith.constant 1 : index
    %c0_34 = arith.constant 0 : index
    %c32_35 = arith.constant 32 : index
    %21 = vector.load %arg1[%c0_32, %c1_33, %c0_34, %c32_35] : memref<2x3x4x288xbf16, #tpu.memory_space<vmem>>, vector<1x1x4x256xbf16>
    %22 = vector.shape_cast %21 : vector<1x1x4x256xbf16> to vector<4x256xbf16>
    %c28 = arith.constant 28 : index
    %c0_36 = arith.constant 0 : index
    %23 = vector.load %arg5[%c28, %c0_36] : memref<36x512xbf16, #tpu.memory_space<vmem>>, vector<4x256xbf16>
    tpu.vector_store %arg5[%c28, %c0_36], %22 {strides = array<i32>} : memref<36x512xbf16, #tpu.memory_space<vmem>>, vector<4x256xbf16>,
    %c0_37 = arith.constant 0 : index
    %c2_38 = arith.constant 2 : index
    %c0_39 = arith.constant 0 : index
    %c32_40 = arith.constant 32 : index
    %24 = vector.load %arg1[%c0_37, %c2_38, %c0_39, %c32_40] : memref<2x3x4x288xbf16, #tpu.memory_space<vmem>>, vector<1x1x4x256xbf16>
    %25 = vector.shape_cast %24 : vector<1x1x4x256xbf16> to vector<4x256xbf16>
    %c32_41 = arith.constant 32 : index
    %c0_42 = arith.constant 0 : index
    %26 = vector.load %arg5[%c32_41, %c0_42] : memref<36x512xbf16, #tpu.memory_space<vmem>>, vector<4x256xbf16>
    tpu.vector_store %arg5[%c32_41, %c0_42], %25 {strides = array<i32>} : memref<36x512xbf16, #tpu.memory_space<vmem>>, vector<4x256xbf16>,
    %c1_43 = arith.constant 1 : index
    %c0_44 = arith.constant 0 : index
    %c0_45 = arith.constant 0 : index
    %c0_46 = arith.constant 0 : index
    %27 = vector.load %arg1[%c1_43, %c0_44, %c0_45, %c0_46] : memref<2x3x4x288xbf16, #tpu.memory_space<vmem>>, vector<1x1x4x256xbf16>
    %28 = vector.shape_cast %27 : vector<1x1x4x256xbf16> to vector<4x256xbf16>
    %c0_47 = arith.constant 0 : index
    %c256 = arith.constant 256 : index
    %29 = vector.load %arg5[%c0_47, %c256] : memref<36x512xbf16, #tpu.memory_space<vmem>>, vector<4x256xbf16>
    tpu.vector_store %arg5[%c0_47, %c256], %28 {strides = array<i32>} : memref<36x512xbf16, #tpu.memory_space<vmem>>, vector<4x256xbf16>,
    %c1_48 = arith.constant 1 : index
    %c1_49 = arith.constant 1 : index
    %c0_50 = arith.constant 0 : index
    %c0_51 = arith.constant 0 : index
    %30 = vector.load %arg1[%c1_48, %c1_49, %c0_50, %c0_51] : memref<2x3x4x288xbf16, #tpu.memory_space<vmem>>, vector<1x1x4x256xbf16>
    %31 = vector.shape_cast %30 : vector<1x1x4x256xbf16> to vector<4x256xbf16>
    %c4_52 = arith.constant 4 : index
    %c256_53 = arith.constant 256 : index
    %32 = vector.load %arg5[%c4_52, %c256_53] : memref<36x512xbf16, #tpu.memory_space<vmem>>, vector<4x256xbf16>
    tpu.vector_store %arg5[%c4_52, %c256_53], %31 {strides = array<i32>} : memref<36x512xbf16, #tpu.memory_space<vmem>>, vector<4x256xbf16>,
    %c1_54 = arith.constant 1 : index
    %c2_55 = arith.constant 2 : index
    %c0_56 = arith.constant 0 : index
    %c0_57 = arith.constant 0 : index
    %33 = vector.load %arg1[%c1_54, %c2_55, %c0_56, %c0_57] : memref<2x3x4x288xbf16, #tpu.memory_space<vmem>>, vector<1x1x4x256xbf16>
    %34 = vector.shape_cast %33 : vector<1x1x4x256xbf16> to vector<4x256xbf16>
    %c8_58 = arith.constant 8 : index
    %c256_59 = arith.constant 256 : index
    %35 = vector.load %arg5[%c8_58, %c256_59] : memref<36x512xbf16, #tpu.memory_space<vmem>>, vector<4x256xbf16>
    tpu.vector_store %arg5[%c8_58, %c256_59], %34 {strides = array<i32>} : memref<36x512xbf16, #tpu.memory_space<vmem>>, vector<4x256xbf16>,
    %c1_60 = arith.constant 1 : index
    %c0_61 = arith.constant 0 : index
    %c0_62 = arith.constant 0 : index
    %c16_63 = arith.constant 16 : index
    %36 = vector.load %arg1[%c1_60, %c0_61, %c0_62, %c16_63] : memref<2x3x4x288xbf16, #tpu.memory_space<vmem>>, vector<1x1x4x256xbf16>
    %37 = vector.shape_cast %36 : vector<1x1x4x256xbf16> to vector<4x256xbf16>
    %c12_64 = arith.constant 12 : index
    %c256_65 = arith.constant 256 : index
    %38 = vector.load %arg5[%c12_64, %c256_65] : memref<36x512xbf16, #tpu.memory_space<vmem>>, vector<4x256xbf16>
    tpu.vector_store %arg5[%c12_64, %c256_65], %37 {strides = array<i32>} : memref<36x512xbf16, #tpu.memory_space<vmem>>, vector<4x256xbf16>,
    %c1_66 = arith.constant 1 : index
    %c1_67 = arith.constant 1 : index
    %c0_68 = arith.constant 0 : index
    %c16_69 = arith.constant 16 : index
    %39 = vector.load %arg1[%c1_66, %c1_67, %c0_68, %c16_69] : memref<2x3x4x288xbf16, #tpu.memory_space<vmem>>, vector<1x1x4x256xbf16>
    %40 = vector.shape_cast %39 : vector<1x1x4x256xbf16> to vector<4x256xbf16>
    %c16_70 = arith.constant 16 : index
    %c256_71 = arith.constant 256 : index
    %41 = vector.load %arg5[%c16_70, %c256_71] : memref<36x512xbf16, #tpu.memory_space<vmem>>, vector<4x256xbf16>
    tpu.vector_store %arg5[%c16_70, %c256_71], %40 {strides = array<i32>} : memref<36x512xbf16, #tpu.memory_space<vmem>>, vector<4x256xbf16>,
    %c1_72 = arith.constant 1 : index
    %c2_73 = arith.constant 2 : index
    %c0_74 = arith.constant 0 : index
    %c16_75 = arith.constant 16 : index
    %42 = vector.load %arg1[%c1_72, %c2_73, %c0_74, %c16_75] : memref<2x3x4x288xbf16, #tpu.memory_space<vmem>>, vector<1x1x4x256xbf16>
    %43 = vector.shape_cast %42 : vector<1x1x4x256xbf16> to vector<4x256xbf16>
    %c20_76 = arith.constant 20 : index
    %c256_77 = arith.constant 256 : index
    %44 = vector.load %arg5[%c20_76, %c256_77] : memref<36x512xbf16, #tpu.memory_space<vmem>>, vector<4x256xbf16>
    tpu.vector_store %arg5[%c20_76, %c256_77], %43 {strides = array<i32>} : memref<36x512xbf16, #tpu.memory_space<vmem>>, vector<4x256xbf16>,
    %c1_78 = arith.constant 1 : index
    %c0_79 = arith.constant 0 : index
    %c0_80 = arith.constant 0 : index
    %c32_81 = arith.constant 32 : index
    %45 = vector.load %arg1[%c1_78, %c0_79, %c0_80, %c32_81] : memref<2x3x4x288xbf16, #tpu.memory_space<vmem>>, vector<1x1x4x256xbf16>
    %46 = vector.shape_cast %45 : vector<1x1x4x256xbf16> to vector<4x256xbf16>
    %c24_82 = arith.constant 24 : index
    %c256_83 = arith.constant 256 : index
    %47 = vector.load %arg5[%c24_82, %c256_83] : memref<36x512xbf16, #tpu.memory_space<vmem>>, vector<4x256xbf16>
    tpu.vector_store %arg5[%c24_82, %c256_83], %46 {strides = array<i32>} : memref<36x512xbf16, #tpu.memory_space<vmem>>, vector<4x256xbf16>,
    %c1_84 = arith.constant 1 : index
    %c1_85 = arith.constant 1 : index
    %c0_86 = arith.constant 0 : index
    %c32_87 = arith.constant 32 : index
    %48 = vector.load %arg1[%c1_84, %c1_85, %c0_86, %c32_87] : memref<2x3x4x288xbf16, #tpu.memory_space<vmem>>, vector<1x1x4x256xbf16>
    %49 = vector.shape_cast %48 : vector<1x1x4x256xbf16> to vector<4x256xbf16>
    %c28_88 = arith.constant 28 : index
    %c256_89 = arith.constant 256 : index
    %50 = vector.load %arg5[%c28_88, %c256_89] : memref<36x512xbf16, #tpu.memory_space<vmem>>, vector<4x256xbf16>
    tpu.vector_store %arg5[%c28_88, %c256_89], %49 {strides = array<i32>} : memref<36x512xbf16, #tpu.memory_space<vmem>>, vector<4x256xbf16>,
    %c1_90 = arith.constant 1 : index
    %c2_91 = arith.constant 2 : index
    %c0_92 = arith.constant 0 : index
    %c32_93 = arith.constant 32 : index
    %51 = vector.load %arg1[%c1_90, %c2_91, %c0_92, %c32_93] : memref<2x3x4x288xbf16, #tpu.memory_space<vmem>>, vector<1x1x4x256xbf16>
    %52 = vector.shape_cast %51 : vector<1x1x4x256xbf16> to vector<4x256xbf16>
    %c32_94 = arith.constant 32 : index
    %c256_95 = arith.constant 256 : index
    %53 = vector.load %arg5[%c32_94, %c256_95] : memref<36x512xbf16, #tpu.memory_space<vmem>>, vector<4x256xbf16>
    tpu.vector_store %arg5[%c32_94, %c256_95], %52 {strides = array<i32>} : memref<36x512xbf16, #tpu.memory_space<vmem>>, vector<4x256xbf16>,
    %c0_96 = arith.constant 0 : index
    %c0_97 = arith.constant 0 : index
    %54 = vector.load %arg2[%c0_96, %c0_97] : memref<8x36xbf16, #tpu.memory_space<vmem>>, vector<8x36xbf16>
    %c0_98 = arith.constant 0 : index
    %c0_99 = arith.constant 0 : index
    %55 = vector.load %arg5[%c0_98, %c0_99] : memref<36x512xbf16, #tpu.memory_space<vmem>>, vector<36x512xbf16>
    %cst = arith.constant dense<0.000000e+00> : vector<8x512xf32>
    %56 = tpu.matmul %54, %55, %cst {dimension_numbers = #tpu.dot_dimension_numbers<[1], [0], [0], [1], [0, 0, 1, 1], [], []>} : vector<8x36xbf16>, vector<36x512xbf16>, vector<8x512xf32> -> vector<8x512xf32>
    %c0_100 = arith.constant 0 : index
    %c0_101 = arith.constant 0 : index
    %57 = vector.load %arg3[%c0_100, %c0_101] : memref<8x1xf32, #tpu.memory_space<vmem>>, vector<8x1xf32>
    %58 = vector.broadcast %57 : vector<8x1xf32> to vector<8x512xf32>
    %59 = arith.addf %56, %58 : vector<8x512xf32>
    %cst_102 = arith.constant 2.000000e-01 : f32
    %60 = vector.broadcast %cst_102 : f32 to vector<8x512xf32>
    %61 = arith.mulf %60, %59 : vector<8x512xf32>
    %62 = arith.maximumf %59, %61 : vector<8x512xf32>
    %63 = vector.extract_strided_slice %62 {offsets = [0, 0], sizes = [8, 256], strides = [1, 1]} : vector<8x512xf32> to vector<8x256xf32>
    %c0_103 = arith.constant 0 : index
    %c0_104 = arith.constant 0 : index
    %c0_105 = arith.constant 0 : index
    %64 = vector.load %arg4[%c0_103, %c0_104, %c0_105] : memref<2x8x256xf32, #tpu.memory_space<vmem>>, vector<1x8x256xf32>
    %65 = vector.shape_cast %64 : vector<1x8x256xf32> to vector<8x256xf32>
    %66 = vector.shape_cast %63 : vector<8x256xf32> to vector<1x8x256xf32>
    tpu.vector_store %arg4[%c0_103, %c0_104, %c0_105], %66 {strides = array<i32>} : memref<2x8x256xf32, #tpu.memory_space<vmem>>, vector<1x8x256xf32>,
    %67 = vector.extract_strided_slice %62 {offsets = [0, 256], sizes = [8, 256], strides = [1, 1]} : vector<8x512xf32> to vector<8x256xf32>
    %c1_106 = arith.constant 1 : index
    %c0_107 = arith.constant 0 : index
    %c0_108 = arith.constant 0 : index
    %68 = vector.load %arg4[%c1_106, %c0_107, %c0_108] : memref<2x8x256xf32, #tpu.memory_space<vmem>>, vector<1x8x256xf32>
    %69 = vector.shape_cast %68 : vector<1x8x256xf32> to vector<8x256xf32>
    %70 = vector.shape_cast %67 : vector<8x256xf32> to vector<1x8x256xf32>
    tpu.vector_store %arg4[%c1_106, %c0_107, %c0_108], %70 {strides = array<i32>} : memref<2x8x256xf32, #tpu.memory_space<vmem>>, vector<1x8x256xf32>,
    return
  }
  func.func @transform_0(%arg0: i32) -> (i32, i32, i32, i32) {
    %c0_i32 = arith.constant 0 : i32
    %c0_i32_0 = arith.constant 0 : i32
    %c0_i32_1 = arith.constant 0 : i32
    %c0_i32_2 = arith.constant 0 : i32
    return %arg0, %c0_i32, %c0_i32_0, %c0_i32_1 : i32, i32, i32, i32
  }
  func.func @transform_1(%arg0: i32) -> (i32, i32) {
    %c0_i32 = arith.constant 0 : i32
    %c0_i32_0 = arith.constant 0 : i32
    %c0_i32_1 = arith.constant 0 : i32
    return %c0_i32, %c0_i32_0 : i32, i32
  }
  func.func @transform_2(%arg0: i32) -> (i32, i32) {
    %c0_i32 = arith.constant 0 : i32
    %c0_i32_0 = arith.constant 0 : i32
    %c0_i32_1 = arith.constant 0 : i32
    return %c0_i32, %c0_i32_0 : i32, i32
  }
  func.func @transform_3(%arg0: i32) -> (i32, i32, i32) {
    %c0_i32 = arith.constant 0 : i32
    %c0_i32_0 = arith.constant 0 : i32
    %c0_i32_1 = arith.constant 0 : i32
    return %arg0, %c0_i32, %c0_i32_0 : i32, i32, i32
  }
}

</mosaic_0001>

<llo_original>
// kernel: basic_conv.1
$region0: #{basic_conv.1}
  #allocation0 [shape = 'u32[]', space=smem, size = 0x4, offset = 0x4, fixed_abs, tag = 'smem constant byte address 0x4 - core index']
  #allocation1 [shape = 'u32[72,128]{1,0:T(1,128)}', space=vmem, size = 0x9000, scoped, tag = 'internal scratch']
  #allocation2 [shape = 'bf16[36,512]{1,0:T(8,128)(2,1)}', space=vmem, size = 0xa000, scoped, tag = 'scratch operand']
  %s0 = inlined_call_operand.vmem [shape: bf16[2,3,4,288], index: 0, kind: input, shape index: {}]
  %s1 = inlined_call_operand.vmem [shape: bf16[8,36], index: 1, kind: input, shape index: {}]
  %s2 = inlined_call_operand.vmem [shape: f32[8,1], index: 2, kind: input, shape index: {}]
  %s3 = inlined_call_operand.vmem [shape: f32[2,8,256], index: 3, kind: output, shape index: {}]
  %s4 = sld [smem:[#allocation0]]
  $region22: #{basic_conv.1} parent=0
    _
  %s6 = ssub.s32 1, %s4
  %s7 = scalar_select 0, %s6, %s4
  // Predicated region
  $region2: #{basic_conv.1} parent=0 // pred_check
    _
  $region3: #{basic_conv.1} parent=0 // pred_check_branch
    %9 = sbr.rel (0) target = $region5
  $region4: #{basic_conv.1} parent=0 // pred_region
    _
  $region5: #{basic_conv.1} parent=0 // pred_fallthru
    _
  // Predicated region
  $region6: #{basic_conv.1} parent=0 // pred_check
    _
  $region7: #{basic_conv.1} parent=0 // pred_check_branch
    %11 = sbr.rel (0) target = $region9
  $region8: #{basic_conv.1} parent=0 // pred_region
    _
  $region9: #{basic_conv.1} parent=0 // pred_fallthru
    _
  // Predicated region
  $region10: #{basic_conv.1} parent=0 // pred_check
    _
  $region11: #{basic_conv.1} parent=0 // pred_check_branch
    %13 = sbr.rel (0) target = $region13
  $region12: #{basic_conv.1} parent=0 // pred_region
    _
  $region13: #{basic_conv.1} parent=0 // pred_fallthru
    _
  %v15 = vld [vmem:[%s0] sm:$0xf]
  %17 = vst [vmem:[#allocation1] ss:$2 sm:$0xff] %v15
  %v18 = vld.sshfl [vmem:[#allocation1] sm:$0xff pattern:$0x75643120]
  %20 = vst [vmem:[#allocation2] sm:$0x33] %v18
  %s21 = scalar_lea.vmem %s0, 6
  %v22 = vld [vmem:[%s21] sm:$0xf]
  %s24 = scalar_lea.vmem [#allocation1], 1
  %25 = vst [vmem:[%s24] ss:$2 sm:$0xff] %v22
  %v26 = vld.sshfl [vmem:[#allocation1] sm:$0xff pattern:$0x75643120]
  %28 = vst [vmem:[#allocation2] sm:$0xcc] %v26
  %s29 = scalar_lea.vmem %s0, 12
  %v30 = vld [vmem:[%s29] sm:$0xf]
  %32 = vst [vmem:[#allocation1] ss:$2 sm:$0xff] %v30
  %v33 = vld.sshfl [vmem:[#allocation1] sm:$0xff pattern:$0x75643120]
  %35 = vst [vmem:[#allocation2 + $0x10] sm:$0x33] %v33
  %v36 = vld [vmem:[%s0] sm:$0x3f]
  %s38 = scalar_lea.vmem [#allocation1], 1
  %39 = vst [vmem:[%s38] ss:$2 sm:$0xff] %v36
  %v40 = vld.sshfl [vmem:[#allocation1] sm:$0xff pattern:$0x75643120]
  %v42 = vld.sshfl [vmem:[#allocation1 + $0x8] sm:$0xff pattern:$0x75643120]
  %44 = vrot.lane.b32.xlu0 %v40, 112
  %v45 = vpop.permute.xlu0 %44
  %46 = vrot.lane.b32.xlu0 %v42, 112
  %v47 = vpop.permute.xlu0 %46
  %v48 = vrot.slane %v45, 4
  %v49 = vrot.slane %v47, 4
  %vm50 = vcmask 1043456
  %v51 = vsel %vm50, %v48, %v49
  %vm52 = vcmask 916480
  %v53 = vsel %vm52, %v45, %v51
  %55 = vst [vmem:[#allocation2 + $0x10] sm:$0xcc] %v53
  %v56 = vld [vmem:[%s21] sm:$0x3f]
  %58 = vst [vmem:[#allocation1] ss:$2 sm:$0xff] %v56
  %v59 = vld.sshfl [vmem:[#allocation1] sm:$0xff pattern:$0x75643120]
  %v61 = vld.sshfl [vmem:[#allocation1 + $0x8] sm:$0xff pattern:$0x75643120]
  %63 = vrot.lane.b32.xlu0 %v59, 112
  %v64 = vpop.permute.xlu0 %63
  %65 = vrot.lane.b32.xlu0 %v61, 112
  %v66 = vpop.permute.xlu0 %65
  %v67 = vrot.slane %v64, 4
  %v68 = vrot.slane %v66, 4
  %v69 = vsel %vm50, %v67, %v68
  %v70 = vsel %vm52, %v64, %v69
  %72 = vst [vmem:[#allocation2 + $0x20] sm:$0x33] %v70
  %v73 = vld [vmem:[%s29] sm:$0x3f]
  %s75 = scalar_lea.vmem [#allocation1], 1
  %76 = vst [vmem:[%s75] ss:$2 sm:$0xff] %v73
  %v77 = vld.sshfl [vmem:[#allocation1] sm:$0xff pattern:$0x75643120]
  %v79 = vld.sshfl [vmem:[#allocation1 + $0x8] sm:$0xff pattern:$0x75643120]
  %81 = vrot.lane.b32.xlu0 %v77, 112
  %v82 = vpop.permute.xlu0 %81
  %83 = vrot.lane.b32.xlu0 %v79, 112
  %v84 = vpop.permute.xlu0 %83
  %v85 = vrot.slane %v82, 4
  %v86 = vrot.slane %v84, 4
  %v87 = vsel %vm50, %v85, %v86
  %v88 = vsel %vm52, %v82, %v87
  %90 = vst [vmem:[#allocation2 + $0x20] sm:$0xcc] %v88
  %v91 = vld [vmem:[%s0] sm:$0x3f]
  %93 = vst [vmem:[#allocation1] ss:$2 sm:$0xff] %v91
  %v94 = vld.sshfl [vmem:[#allocation1] sm:$0xff pattern:$0x75643120]
  %v96 = vld.sshfl [vmem:[#allocation1 + $0x8] sm:$0xff pattern:$0x75643120]
  %98 = vrot.lane.b32.xlu0 %v94, 96
  %v99 = vpop.permute.xlu0 %98
  %100 = vrot.lane.b32.xlu0 %v96, 96
  %v101 = vpop.permute.xlu0 %100
  %v102 = vrot.slane %v99, 4
  %v103 = vrot.slane %v101, 4
  %v104 = vsel %vm50, %v102, %v103
  %vm105 = vcmask 785408
  %v106 = vsel %vm105, %v99, %v104
  %108 = vst [vmem:[#allocation2 + $0x30] sm:$0x33] %v106
  %v109 = vld [vmem:[%s21] sm:$0x3f]
  %s111 = scalar_lea.vmem [#allocation1], 1
  %112 = vst [vmem:[%s111] ss:$2 sm:$0xff] %v109
  %v113 = vld.sshfl [vmem:[#allocation1] sm:$0xff pattern:$0x75643120]
  %v115 = vld.sshfl [vmem:[#allocation1 + $0x8] sm:$0xff pattern:$0x75643120]
  %117 = vrot.lane.b32.xlu0 %v113, 96
  %v118 = vpop.permute.xlu0 %117
  %119 = vrot.lane.b32.xlu0 %v115, 96
  %v120 = vpop.permute.xlu0 %119
  %v121 = vrot.slane %v118, 4
  %v122 = vrot.slane %v120, 4
  %v123 = vsel %vm50, %v121, %v122
  %v124 = vsel %vm105, %v118, %v123
  %126 = vst [vmem:[#allocation2 + $0x30] sm:$0xcc] %v124
  %v127 = vld [vmem:[%s29] sm:$0x3f]
  %129 = vst [vmem:[#allocation1] ss:$2 sm:$0xff] %v127
  %v130 = vld.sshfl [vmem:[#allocation1] sm:$0xff pattern:$0x75643120]
  %v132 = vld.sshfl [vmem:[#allocation1 + $0x8] sm:$0xff pattern:$0x75643120]
  %134 = vrot.lane.b32.xlu0 %v130, 96
  %v135 = vpop.permute.xlu0 %134
  %136 = vrot.lane.b32.xlu0 %v132, 96
  %v137 = vpop.permute.xlu0 %136
  %v138 = vrot.slane %v135, 4
  %v139 = vrot.slane %v137, 4
  %v140 = vsel %vm50, %v138, %v139
  %v141 = vsel %vm105, %v135, %v140
  %143 = vst [vmem:[#allocation2 + $0x40] sm:$0x33] %v141
  %s144 = scalar_lea.vmem %s0, 18
  %v145 = vld [vmem:[%s144] sm:$0xf]
  %147 = vst [vmem:[#allocation1] ss:$2 sm:$0xff] %v145
  %v148 = vld.sshfl [vmem:[#allocation1] sm:$0xff pattern:$0x75643120]
  %150 = vst [vmem:[#allocation2 + $0x8] sm:$0x33] %v148
  %s151 = scalar_lea.vmem %s0, 24
  %v152 = vld [vmem:[%s151] sm:$0xf]
  %s154 = scalar_lea.vmem [#allocation1], 1
  %155 = vst [vmem:[%s154] ss:$2 sm:$0xff] %v152
  %v156 = vld.sshfl [vmem:[#allocation1] sm:$0xff pattern:$0x75643120]
  %158 = vst [vmem:[#allocation2 + $0x8] sm:$0xcc] %v156
  %s159 = scalar_lea.vmem %s0, 30
  %v160 = vld [vmem:[%s159] sm:$0xf]
  %162 = vst [vmem:[#allocation1] ss:$2 sm:$0xff] %v160
  %v163 = vld.sshfl [vmem:[#allocation1] sm:$0xff pattern:$0x75643120]
  %165 = vst [vmem:[#allocation2 + $0x18] sm:$0x33] %v163
  %v166 = vld [vmem:[%s144] sm:$0x3f]
  %s168 = scalar_lea.vmem [#allocation1], 1
  %169 = vst [vmem:[%s168] ss:$2 sm:$0xff] %v166
  %v170 = vld.sshfl [vmem:[#allocation1] sm:$0xff pattern:$0x75643120]
  %v172 = vld.sshfl [vmem:[#allocation1 + $0x8] sm:$0xff pattern:$0x75643120]
  %174 = vrot.lane.b32.xlu0 %v170, 112
  %v175 = vpop.permute.xlu0 %174
  %176 = vrot.lane.b32.xlu0 %v172, 112
  %v177 = vpop.permute.xlu0 %176
  %v178 = vrot.slane %v175, 4
  %v179 = vrot.slane %v177, 4
  %v180 = vsel %vm50, %v178, %v179
  %v181 = vsel %vm52, %v175, %v180
  %183 = vst [vmem:[#allocation2 + $0x18] sm:$0xcc] %v181
  %v184 = vld [vmem:[%s151] sm:$0x3f]
  %186 = vst [vmem:[#allocation1] ss:$2 sm:$0xff] %v184
  %v187 = vld.sshfl [vmem:[#allocation1] sm:$0xff pattern:$0x75643120]
  %v189 = vld.sshfl [vmem:[#allocation1 + $0x8] sm:$0xff pattern:$0x75643120]
  %191 = vrot.lane.b32.xlu0 %v187, 112
  %v192 = vpop.permute.xlu0 %191
  %193 = vrot.lane.b32.xlu0 %v189, 112
  %v194 = vpop.permute.xlu0 %193
  %v195 = vrot.slane %v192, 4
  %v196 = vrot.slane %v194, 4
  %v197 = vsel %vm50, %v195, %v196
  %v198 = vsel %vm52, %v192, %v197
  %200 = vst [vmem:[#allocation2 + $0x28] sm:$0x33] %v198
  %v201 = vld [vmem:[%s159] sm:$0x3f]
  %s203 = scalar_lea.vmem [#allocation1], 1
  %204 = vst [vmem:[%s203] ss:$2 sm:$0xff] %v201
  %v205 = vld.sshfl [vmem:[#allocation1] sm:$0xff pattern:$0x75643120]
  %v207 = vld.sshfl [vmem:[#allocation1 + $0x8] sm:$0xff pattern:$0x75643120]
  %209 = vrot.lane.b32.xlu0 %v205, 112
  %v210 = vpop.permute.xlu0 %209
  %211 = vrot.lane.b32.xlu0 %v207, 112
  %v212 = vpop.permute.xlu0 %211
  %v213 = vrot.slane %v210, 4
  %v214 = vrot.slane %v212, 4
  %v215 = vsel %vm50, %v213, %v214
  %v216 = vsel %vm52, %v210, %v215
  %218 = vst [vmem:[#allocation2 + $0x28] sm:$0xcc] %v216
  %v219 = vld [vmem:[%s144] sm:$0x3f]
  %221 = vst [vmem:[#allocation1] ss:$2 sm:$0xff] %v219
  %v222 = vld.sshfl [vmem:[#allocation1] sm:$0xff pattern:$0x75643120]
  %v224 = vld.sshfl [vmem:[#allocation1 + $0x8] sm:$0xff pattern:$0x75643120]
  %226 = vrot.lane.b32.xlu0 %v222, 96
  %v227 = vpop.permute.xlu0 %226
  %228 = vrot.lane.b32.xlu0 %v224, 96
  %v229 = vpop.permute.xlu0 %228
  %v230 = vrot.slane %v227, 4
  %v231 = vrot.slane %v229, 4
  %v232 = vsel %vm50, %v230, %v231
  %v233 = vsel %vm105, %v227, %v232
  %235 = vst [vmem:[#allocation2 + $0x38] sm:$0x33] %v233
  %v236 = vld [vmem:[%s151] sm:$0x3f]
  %s238 = scalar_lea.vmem [#allocation1], 1
  %239 = vst [vmem:[%s238] ss:$2 sm:$0xff] %v236
  %v240 = vld.sshfl [vmem:[#allocation1] sm:$0xff pattern:$0x75643120]
  %v242 = vld.sshfl [vmem:[#allocation1 + $0x8] sm:$0xff pattern:$0x75643120]
  %244 = vrot.lane.b32.xlu0 %v240, 96
  %v245 = vpop.permute.xlu0 %244
  %246 = vrot.lane.b32.xlu0 %v242, 96
  %v247 = vpop.permute.xlu0 %246
  %v248 = vrot.slane %v245, 4
  %v249 = vrot.slane %v247, 4
  %v250 = vsel %vm50, %v248, %v249
  %v251 = vsel %vm105, %v245, %v250
  %253 = vst [vmem:[#allocation2 + $0x38] sm:$0xcc] %v251
  %v254 = vld [vmem:[%s159] sm:$0x3f]
  %256 = vst [vmem:[#allocation1] ss:$2 sm:$0xff] %v254
  %v257 = vld.sshfl [vmem:[#allocation1] sm:$0xff pattern:$0x75643120]
  %v259 = vld.sshfl [vmem:[#allocation1 + $0x8] sm:$0xff pattern:$0x75643120]
  %261 = vrot.lane.b32.xlu0 %v257, 96
  %v262 = vpop.permute.xlu0 %261
  %263 = vrot.lane.b32.xlu0 %v259, 96
  %v264 = vpop.permute.xlu0 %263
  %v265 = vrot.slane %v262, 4
  %v266 = vrot.slane %v264, 4
  %v267 = vsel %vm50, %v265, %v266
  %v268 = vsel %vm105, %v262, %v267
  %270 = vst [vmem:[#allocation2 + $0x48] sm:$0x33] %v268
  %v271 = vld [vmem:[%s1] sm:$0xf]
  %v272 = vld [vmem:[#allocation2] sm:$0xff]
  %v273 = vld [vmem:[#allocation2 + $0x8] sm:$0xff]
  %v274 = vld [vmem:[#allocation2 + $0x10] sm:$0xff]
  %v275 = vld [vmem:[#allocation2 + $0x18] sm:$0xff]
  %v276 = vld [vmem:[#allocation2 + $0x20] sm:$0xff]
  %v277 = vld [vmem:[#allocation2 + $0x28] sm:$0xff]
  %v278 = vld [vmem:[#allocation2 + $0x30] sm:$0xff]
  %v279 = vld [vmem:[#allocation2 + $0x38] sm:$0xff]
  %v280 = vld [vmem:[#allocation2 + $0x40] sm:$0x33]
  %v281 = vld [vmem:[#allocation2 + $0x48] sm:$0x33]
  %v282 = vld [vmem:[%s2] sm:$0xff]
  %284 = vset.pattern.permute.xlu0 0
  %285 = vperm.xlu0 %284, %v282
  %v286 = vpop.permute.xlu0 %285
  %v298 = vunpack.c.l.b16 %v272
  %v299 = vunpack.c.h.b16 %v272
  %v300 = vunpack.c.l.b16 %v273
  %v301 = vunpack.c.h.b16 %v273
  %v302 = vunpack.c.l.b16 %v274
  %v303 = vunpack.c.h.b16 %v274
  %v304 = vunpack.c.l.b16 %v275
  %v305 = vunpack.c.h.b16 %v275
  %v306 = vunpack.c.l.b16 %v276
  %v307 = vunpack.c.h.b16 %v276
  %v308 = vunpack.c.l.b16 %v277
  %v309 = vunpack.c.h.b16 %v277
  %v310 = vunpack.c.l.b16 %v278
  %v311 = vunpack.c.h.b16 %v278
  %v312 = vunpack.c.l.b16 %v279
  %v313 = vunpack.c.h.b16 %v279
  %v314 = vunpack.c.l.b16 %v280
  %v315 = vunpack.c.h.b16 %v280
  %v316 = vunpack.c.l.b16 %v281
  %v317 = vunpack.c.h.b16 %v281
  %v318 = vpack.c.b16 %v302, %v298
  %v319 = vpack.c.b16 %v303, %v299
  %v320 = vpack.c.b16 %v304, %v300
  %v321 = vpack.c.b16 %v305, %v301
  %v322 = vpack.c.b16 %v310, %v306
  %v323 = vpack.c.b16 %v311, %v307
  %v324 = vpack.c.b16 %v312, %v308
  %v325 = vpack.c.b16 %v313, %v309
  %v326 = vpack.c.b16 %v314, %v314
  %v327 = vpack.c.b16 %v315, %v315
  %v328 = vpack.c.b16 %v316, %v316
  %v329 = vpack.c.b16 %v317, %v317
  %vm338 = vcmask 293888
  %v340 = vsel %vm338, %v271, 0
  %vm342 = vcmask 1041408
  %v344 = vsel %vm342, %v326, 0
  %v347 = vsel %vm342, %v327, 0
  %v350 = vsel %vm342, %v328, 0
  %v353 = vsel %vm342, %v329, 0
  %355 = vmatpush.bf16.msra.mxu0 0
  %356 = vmatpush.bf16.msra.mxu0 0
  %357 = vmatpush.bf16.msra.mxu0 0
  %358 = vmatpush.bf16.msra.mxu0 0
  %359 = vmatpush.bf16.msra.mxu0 0
  %360 = vmatpush.bf16.msra.mxu0 %v344
  %361 = vmatpush.bf16.msra.mxu0 %v322
  %362 = vmatpush.bf16.msra.mxu0 %v318
  %363 = vmatmul.bf16.gmra.mxu0 %v340
  %v364 = vpop.f32.mrf.mxu0
  %v365 = vadd.f32 %v286, %v364
  %v366 = vpop.f32.mrf.mxu0
  %367 = vdwg.mxu0
  %368 = vmatpush.bf16.msra.mxu0 0
  %369 = vmatpush.bf16.msra.mxu0 0
  %370 = vmatpush.bf16.msra.mxu0 0
  %371 = vmatpush.bf16.msra.mxu0 0
  %372 = vmatpush.bf16.msra.mxu0 0
  %373 = vmatpush.bf16.msra.mxu0 %v347
  %374 = vmatpush.bf16.msra.mxu0 %v323
  %375 = vmatpush.bf16.msra.mxu0 %v319
  %376 = vmatmul.bf16.gmra.mxu0 %v340
  %v377 = vpop.f32.mrf.mxu0
  %v378 = vadd.f32 %v286, %v377
  %v379 = vpop.f32.mrf.mxu0
  %380 = vdwg.mxu0
  %381 = vmatpush.bf16.msra.mxu0 0
  %382 = vmatpush.bf16.msra.mxu0 0
  %383 = vmatpush.bf16.msra.mxu0 0
  %384 = vmatpush.bf16.msra.mxu0 0
  %385 = vmatpush.bf16.msra.mxu0 0
  %386 = vmatpush.bf16.msra.mxu0 %v350
  %387 = vmatpush.bf16.msra.mxu0 %v324
  %388 = vmatpush.bf16.msra.mxu0 %v320
  %389 = vmatmul.bf16.gmra.mxu0 %v340
  %v390 = vpop.f32.mrf.mxu0
  %v391 = vadd.f32 %v286, %v390
  %v392 = vpop.f32.mrf.mxu0
  %393 = vdwg.mxu0
  %394 = vmatpush.bf16.msra.mxu0 0
  %395 = vmatpush.bf16.msra.mxu0 0
  %396 = vmatpush.bf16.msra.mxu0 0
  %397 = vmatpush.bf16.msra.mxu0 0
  %398 = vmatpush.bf16.msra.mxu0 0
  %399 = vmatpush.bf16.msra.mxu0 %v353
  %400 = vmatpush.bf16.msra.mxu0 %v325
  %401 = vmatpush.bf16.msra.mxu0 %v321
  %402 = vmatmul.bf16.gmra.mxu0 %v340
  %v403 = vpop.f32.mrf.mxu0
  %v404 = vadd.f32 %v286, %v403
  %v405 = vpop.f32.mrf.mxu0
  %406 = vdwg.mxu0
  %v407 = vmul.f32 %v365, 0.2
  %v408 = vmul.f32 %v378, 0.2
  %v409 = vmul.f32 %v391, 0.2
  %v410 = vmul.f32 %v404, 0.2
  %v411 = vmax.f32 %v365, %v407
  %v412 = vmax.f32 %v378, %v408
  %v413 = vmax.f32 %v391, %v409
  %v414 = vmax.f32 %v404, %v410
  %415 = vst [vmem:[%s3] sm:$0xff] %v411
  %416 = vst [vmem:[%s3 + $0x8] sm:$0xff] %v412
  %s417 = scalar_lea.vmem %s3, 16
  %418 = vst [vmem:[%s417] sm:$0xff] %v413
  %419 = vst [vmem:[%s417 + $0x8] sm:$0xff] %v414
  // Predicated region
  $region14: #{basic_conv.1} parent=0 // pred_check
    _
  $region15: #{basic_conv.1} parent=0 // pred_check_branch
    %421 = sbr.rel (0) target = $region17
  $region16: #{basic_conv.1} parent=0 // pred_region
    _
  $region17: #{basic_conv.1} parent=0 // pred_fallthru
    _
  // Predicated region
  $region18: #{basic_conv.1} parent=0 // pred_check
    _
  $region19: #{basic_conv.1} parent=0 // pred_check_branch
    %423 = sbr.rel (0) target = $region21
  $region20: #{basic_conv.1} parent=0 // pred_region
    _
  $region21: #{basic_conv.1} parent=0 // pred_fallthru
    _

</llo_original>
